<compile_context>
chip_gen: v6e
topology: v6e:2x2x1
jax: 0.10.0
libtpu: 0.0.40
codegen_flags: <defaults>
</compile_context>

<pallas_src>
import jax
import jax.numpy as jnp
from jax.experimental import pallas as pl
from jax.experimental.pallas import tpu as pltpu

_SQRT_HALF = 0.7071067811865476


def _erf(z):
    # Abramowitz & Stegun 7.1.26, max abs error ~1.5e-7.  The divide goes to
    # the EUP (approx reciprocal) + one Newton step; the rest is VPU-only.
    p = 0.3275911
    a1, a2, a3, a4, a5 = (0.254829592, -0.284496736, 1.421413741,
                          -1.453152027, 1.061405429)
    az = jnp.abs(z)
    d = 1.0 + p * az
    t = pl.reciprocal(d, approx=True)
    t = t * (2.0 - d * t)                      # Newton refinement -> ~f32 accuracy
    poly = ((((a5 * t + a4) * t + a3) * t + a2) * t + a1) * t
    y = 1.0 - poly * jnp.exp(-az * az)
    return jnp.where(z < 0.0, -y, y)


def _gelu_exact(h):
    # Matches PyTorch nn.GELU() (exact erf form) to ~1e-6 absolute.
    return 0.5 * h * (1.0 + _erf(h * _SQRT_HALF))


# ----------------------------- kernels --------------------------------------


def _ffn_kernel_resident(x_ref, w1_ref, b1_ref, w2_ref, b2_ref, o_ref):
    """grid = (row tiles,).  Full W1/W2/b1/b2 stay resident in VMEM."""
    h = jnp.dot(x_ref[...], w1_ref[...], preferred_element_type=jnp.float32)
    h = _gelu_exact(h + b1_ref[...].astype(jnp.float32))
    out = jnp.dot(h.astype(w2_ref.dtype), w2_ref[...],
                  preferred_element_type=jnp.float32)
    o_ref[...] = (out + b2_ref[...].astype(jnp.float32)).astype(o_ref.dtype)


def _ffn_kernel_tiled_inplace(x_ref, w1_ref, b1_ref, w2_ref, b2_ref, o_ref):
    """grid = (row tiles i, hidden tiles j).  f32 output doubles as accumulator."""
    j = pl.program_id(1)
    h = jnp.dot(x_ref[...], w1_ref[...], preferred_element_type=jnp.float32)
    h = _gelu_exact(h + b1_ref[...].astype(jnp.float32))
    contrib = jnp.dot(h.astype(w2_ref.dtype), w2_ref[...],
                      preferred_element_type=jnp.float32)

    @pl.when(j == 0)
    def _init():
        o_ref[...] = contrib + b2_ref[...].astype(jnp.float32)

    @pl.when(j > 0)
    def _accum():
        o_ref[...] += contrib


def _ffn_kernel_tiled_scratch(x_ref, w1_ref, b1_ref, w2_ref, b2_ref, o_ref,
                              acc_ref):
    """Tiled reduction with an f32 scratch accumulator (non-f32 outputs)."""
    j = pl.program_id(1)

    @pl.when(j == 0)
    def _init():
        acc_ref[...] = jnp.zeros_like(acc_ref)

    h = jnp.dot(x_ref[...], w1_ref[...], preferred_element_type=jnp.float32)
    h = _gelu_exact(h + b1_ref[...].astype(jnp.float32))
    acc_ref[...] += jnp.dot(h.astype(w2_ref.dtype), w2_ref[...],
                            preferred_element_type=jnp.float32)

    @pl.when(j == pl.num_programs(1) - 1)
    def _finalize():
        o_ref[...] = (acc_ref[...]
                      + b2_ref[...].astype(jnp.float32)).astype(o_ref.dtype)


# ----------------------------- wrapper ---------------------------------------


def _round_up(v, m):
    return ((v + m - 1) // m) * m


def _vmem_limit_bytes():
    # 75% of physical VMEM, capped: ~96 MiB on v5e/v6e (128 MiB physical),
    # ~48 MiB on v7x (64 MiB).  Conservative fallback if the query fails.
    try:
        cap = getattr(pltpu.get_tpu_info(), "vmem_capacity_bytes",
                      64 * 1024 * 1024)
    except Exception:
        cap = 64 * 1024 * 1024
    return int(min(cap * 3 // 4, 96 * 1024 * 1024))


def feed_forward(x, w1, b1, w2, b2, *, tm=None, th=None, compute_dtype=None):
    """FeedForward.forward.  x: (B, N, D); w1: (D, H); b1: (H,); w2: (H, D); b2: (D,)."""
    B, N, D = x.shape
    H = w1.shape[1]
    R = B * N

    x2d = x.reshape(R, D)
    if compute_dtype is not None:        # e.g. jnp.bfloat16 to feed v6e/v7x MXUs
        x2d = x2d.astype(compute_dtype)
        w1 = w1.astype(compute_dtype)
        w2 = w2.astype(compute_dtype)

    out_dtype = x.dtype
    in_bytes = jnp.dtype(x2d.dtype).itemsize
    w_bytes = jnp.dtype(w1.dtype).itemsize
    b_bytes = jnp.dtype(b1.dtype).itemsize
    out_bytes = jnp.dtype(out_dtype).itemsize

    # Lane-dense model dim: pad D to a multiple of 128.  Zero-padded weight
    # rows/cols contribute nothing; padded output columns are sliced off.
    Dp = _round_up(D, 128)
    if Dp != D:
        x2d = jnp.pad(x2d, ((0, 0), (0, Dp - D)))
        w1 = jnp.pad(w1, ((0, Dp - D), (0, 0)))
        w2 = jnp.pad(w2, ((0, 0), (0, Dp - D)))
        b2 = jnp.pad(b2, ((0, Dp - D),))

    vmem_limit = _vmem_limit_bytes()

    # Row (M) tile: big enough to amortize weight streaming, but always >= 2
    # tiles when R allows so v7x's second TensorCore gets work.
    if tm is None:
        tm = 512 if R >= 512 else _round_up(R, 8)
        if R > 8:
            tm = min(tm, _round_up(pl.cdiv(R, 2), 8))
    r_pad = _round_up(R, tm)
    if r_pad != R:
        x2d = jnp.pad(x2d, ((0, r_pad - R), (0, 0)))
    grid_i = r_pad // tm

    b1_2d = b1.reshape(1, H)
    b2_2d = b2.reshape(1, Dp)

    # VMEM budget pieces (double-buffered streaming tiles).
    io_bytes = 2 * tm * Dp * in_bytes + 2 * tm * Dp * out_bytes
    weight_bytes = (Dp * H + H * Dp) * w_bytes + (H + Dp) * b_bytes

    fast_path = 2 * weight_bytes + io_bytes <= (vmem_limit * 7) // 10

    if fast_path:
        # Weights resident; no hidden reduction axis; no scratch accumulator.
        kernel = _ffn_kernel_resident
        grid = (grid_i,)
        in_specs = [
            pl.BlockSpec((tm, Dp), lambda i: (i, 0)),   # x row tile
            pl.BlockSpec((Dp, H), lambda i: (0, 0)),    # W1 (resident)
            pl.BlockSpec((1, H), lambda i: (0, 0)),     # b1 (resident)
            pl.BlockSpec((H, Dp), lambda i: (0, 0)),    # W2 (resident)
            pl.BlockSpec((1, Dp), lambda i: (0, 0)),    # b2 (resident)
        ]
        out_specs = pl.BlockSpec((tm, Dp), lambda i: (i, 0))
        scratch_shapes = []
        dim_sem = ("parallel",)
        weight_reads = 1
    else:
        # Hidden (reduction) tile: largest 256-multiple (128 last resort) whose
        # double-buffered W1+W2 slabs fit the VMEM budget.
        acc_bytes = 0 if jnp.dtype(out_dtype) == jnp.float32 else tm * Dp * 4
        if th is None:
            w_budget = max(vmem_limit - io_bytes - acc_bytes, 4 * 1024 * 1024)
            th = H
            for t in (1024, 512, 256, 128):
                if H % t == 0 and 4 * Dp * t * w_bytes <= w_budget:
                    th = t
                    break
        grid = (grid_i, H // th)
        in_specs = [
            pl.BlockSpec((tm, Dp), lambda i, j: (i, 0)),   # x (const in j)
            pl.BlockSpec((Dp, th), lambda i, j: (0, j)),   # W1 hidden slab
            pl.BlockSpec((1, th), lambda i, j: (0, j)),    # b1 hidden slab
            pl.BlockSpec((th, Dp), lambda i, j: (j, 0)),   # W2 hidden slab
            pl.BlockSpec((1, Dp), lambda i, j: (0, 0)),    # b2
        ]
        out_specs = pl.BlockSpec((tm, Dp), lambda i, j: (i, 0))
        if jnp.dtype(out_dtype) == jnp.float32:
            kernel = _ffn_kernel_tiled_inplace       # accumulate into o_ref
            scratch_shapes = []
        else:
            kernel = _ffn_kernel_tiled_scratch
            scratch_shapes = [pltpu.VMEM((tm, Dp), jnp.float32)]
        dim_sem = ("parallel", "arbitrary")
        weight_reads = grid_i                        # weights re-streamed per row tile

    cost = pl.CostEstimate(
        flops=4 * r_pad * Dp * H,                    # two matmuls
        transcendentals=2 * r_pad * H,               # exp + reciprocal per GELU elem
        bytes_accessed=(r_pad * Dp * (in_bytes + out_bytes)
                        + weight_reads * 2 * Dp * H * w_bytes
                        + (H + Dp) * b_bytes),
    )

    out2d = pl.pallas_call(
        kernel,
        out_shape=jax.ShapeDtypeStruct((r_pad, Dp), out_dtype),
        grid_spec=pltpu.PrefetchScalarGridSpec(
            num_scalar_prefetch=0,
            grid=grid,
            in_specs=in_specs,
            out_specs=out_specs,
            scratch_shapes=scratch_shapes,
        ),
        compiler_params=pltpu.CompilerParams(
            dimension_semantics=dim_sem,
            vmem_limit_bytes=vmem_limit,
        ),
        cost_estimate=cost,
    )(x2d, w1, b1_2d, w2, b2_2d)

    return out2d[:R, :D].reshape(B, N, D)


if __name__ == "__main__":
    B, N, D, H = 2, 8, 32, 64
    key = jax.random.PRNGKey(0)
    kx, k1, k2, k3, k4 = jax.random.split(key, 5)

    x = jax.random.normal(kx, (B, N, D), dtype=jnp.float32)
    w1 = jax.random.normal(k1, (D, H), dtype=jnp.float32) / jnp.sqrt(D)
    b1 = jax.random.normal(k2, (H,), dtype=jnp.float32) * 0.01
    w2 = jax.random.normal(k3, (H, D), dtype=jnp.float32) / jnp.sqrt(H)
    b2 = jax.random.normal(k4, (D,), dtype=jnp.float32) * 0.01

    out = feed_forward(x, w1, b1, w2, b2)
    out = jax.block_until_ready(out)

    # Pure-JAX reference: Linear -> exact GELU -> Linear (Dropout p=0 = identity).
    hi = jax.lax.Precision.HIGHEST
    h_ref = jnp.einsum("bnd,dh->bnh", x, w1, precision=hi) + b1
    h_ref = 0.5 * h_ref * (1.0 + jax.scipy.special.erf(h_ref * _SQRT_HALF))
    ref = jnp.einsum("bnh,hd->bnd", h_ref, w2, precision=hi) + b2

    assert out.shape == (B, N, D)
    err = float(jnp.max(jnp.abs(out - ref)))
    assert jnp.allclose(out, ref, atol=2e-4, rtol=2e-4), err

    print("KERNEL_OK")
</pallas_src>

<mosaic_0001>
module attributes {stable_mosaic.version = 11 : i64} {
  func.func @_ffn_kernel_resident(%arg0: i32, %arg1: memref<8x128xf32, #tpu.memory_space<vmem>>, %arg2: memref<128x64xf32, #tpu.memory_space<vmem>>, %arg3: memref<1x64xf32, #tpu.memory_space<vmem>>, %arg4: memref<64x128xf32, #tpu.memory_space<vmem>>, %arg5: memref<1x128xf32, #tpu.memory_space<vmem>>, %arg6: memref<8x128xf32, #tpu.memory_space<vmem>>) attributes {dimension_semantics = [#tpu.dimension_semantics<parallel>], iteration_bounds = array<i64: 2>, scalar_prefetch = 0 : i64, scratch_operands = 0 : i64, tpu.core_type = #tpu.core_type<tc>, window_params = [{transform_indices = @transform_0, window_bounds = array<i64: 8, 128>}, {pipeline_mode = #tpu.pipeline_mode<synchronous>, transform_indices = @transform_1, window_bounds = array<i64: 128, 64>}, {pipeline_mode = #tpu.pipeline_mode<synchronous>, transform_indices = @transform_2, window_bounds = array<i64: 1, 64>}, {pipeline_mode = #tpu.pipeline_mode<synchronous>, transform_indices = @transform_3, window_bounds = array<i64: 64, 128>}, {pipeline_mode = #tpu.pipeline_mode<synchronous>, transform_indices = @transform_4, window_bounds = array<i64: 1, 128>}, {transform_indices = @transform_5, window_bounds = array<i64: 8, 128>}]} {
    %c0 = arith.constant 0 : index
    %c0_0 = arith.constant 0 : index
    %0 = vector.load %arg1[%c0, %c0_0] : memref<8x128xf32, #tpu.memory_space<vmem>>, vector<8x128xf32>
    %c0_1 = arith.constant 0 : index
    %c0_2 = arith.constant 0 : index
    %1 = vector.load %arg2[%c0_1, %c0_2] : memref<128x64xf32, #tpu.memory_space<vmem>>, vector<128x64xf32>
    %cst = arith.constant dense<0.000000e+00> : vector<8x64xf32>
    %2 = tpu.matmul %0, %1, %cst {dimension_numbers = #tpu.dot_dimension_numbers<[1], [0], [0], [1], [0, 0, 1, 1], [], []>} : vector<8x128xf32>, vector<128x64xf32>, vector<8x64xf32> -> vector<8x64xf32>
    %c0_3 = arith.constant 0 : index
    %c0_4 = arith.constant 0 : index
    %3 = vector.load %arg3[%c0_3, %c0_4] : memref<1x64xf32, #tpu.memory_space<vmem>>, vector<1x64xf32>
    %4 = vector.broadcast %3 : vector<1x64xf32> to vector<8x64xf32>
    %5 = arith.addf %2, %4 : vector<8x64xf32>
    %cst_5 = arith.constant 5.000000e-01 : f32
    %6 = vector.broadcast %cst_5 : f32 to vector<8x64xf32>
    %7 = arith.mulf %6, %5 : vector<8x64xf32>
    %cst_6 = arith.constant 0.707106769 : f32
    %8 = vector.broadcast %cst_6 : f32 to vector<8x64xf32>
    %9 = arith.mulf %5, %8 : vector<8x64xf32>
    %10 = math.absf %9 : vector<8x64xf32>
    %cst_7 = arith.constant 0.327591091 : f32
    %11 = vector.broadcast %cst_7 : f32 to vector<8x64xf32>
    %12 = arith.mulf %11, %10 : vector<8x64xf32>
    %cst_8 = arith.constant 1.000000e+00 : f32
    %13 = vector.broadcast %cst_8 : f32 to vector<8x64xf32>
    %14 = arith.addf %13, %12 : vector<8x64xf32>
    %15 = tpu.reciprocal %14 {approx = true} : vector<8x64xf32> -> vector<8x64xf32>
    %16 = arith.mulf %14, %15 : vector<8x64xf32>
    %cst_9 = arith.constant 2.000000e+00 : f32
    %17 = vector.broadcast %cst_9 : f32 to vector<8x64xf32>
    %18 = arith.subf %17, %16 : vector<8x64xf32>
    %19 = arith.mulf %15, %18 : vector<8x64xf32>
    %cst_10 = arith.constant 1.06140542 : f32
    %20 = vector.broadcast %cst_10 : f32 to vector<8x64xf32>
    %21 = arith.mulf %20, %19 : vector<8x64xf32>
    %cst_11 = arith.constant -1.45315206 : f32
    %22 = vector.broadcast %cst_11 : f32 to vector<8x64xf32>
    %23 = arith.addf %21, %22 : vector<8x64xf32>
    %24 = arith.mulf %23, %19 : vector<8x64xf32>
    %cst_12 = arith.constant 1.42141378 : f32
    %25 = vector.broadcast %cst_12 : f32 to vector<8x64xf32>
    %26 = arith.addf %24, %25 : vector<8x64xf32>
    %27 = arith.mulf %26, %19 : vector<8x64xf32>
    %cst_13 = arith.constant -0.284496725 : f32
    %28 = vector.broadcast %cst_13 : f32 to vector<8x64xf32>
    %29 = arith.addf %27, %28 : vector<8x64xf32>
    %30 = arith.mulf %29, %19 : vector<8x64xf32>
    %cst_14 = arith.constant 0.254829586 : f32
    %31 = vector.broadcast %cst_14 : f32 to vector<8x64xf32>
    %32 = arith.addf %30, %31 : vector<8x64xf32>
    %33 = arith.mulf %32, %19 : vector<8x64xf32>
    %cst_15 = arith.constant 0.000000e+00 : f32
    %34 = vector.broadcast %cst_15 : f32 to vector<8x64xf32>
    %35 = arith.subf %34, %10 : vector<8x64xf32>
    %36 = arith.mulf %35, %10 : vector<8x64xf32>
    %37 = math.exp %36 : vector<8x64xf32>
    %38 = arith.mulf %33, %37 : vector<8x64xf32>
    %cst_16 = arith.constant 1.000000e+00 : f32
    %39 = vector.broadcast %cst_16 : f32 to vector<8x64xf32>
    %40 = arith.subf %39, %38 : vector<8x64xf32>
    %cst_17 = arith.constant 0.000000e+00 : f32
    %41 = vector.broadcast %cst_17 : f32 to vector<8x64xf32>
    %42 = arith.cmpf olt, %9, %41 : vector<8x64xf32>
    %cst_18 = arith.constant 0.000000e+00 : f32
    %43 = vector.broadcast %cst_18 : f32 to vector<8x64xf32>
    %44 = arith.subf %43, %40 : vector<8x64xf32>
    %45 = arith.select %42, %44, %40 : vector<8x64xi1>, vector<8x64xf32>
    %cst_19 = arith.constant 1.000000e+00 : f32
    %46 = vector.broadcast %cst_19 : f32 to vector<8x64xf32>
    %47 = arith.addf %46, %45 : vector<8x64xf32>
    %48 = arith.mulf %7, %47 : vector<8x64xf32>
    %c0_20 = arith.constant 0 : index
    %c0_21 = arith.constant 0 : index
    %49 = vector.load %arg4[%c0_20, %c0_21] : memref<64x128xf32, #tpu.memory_space<vmem>>, vector<64x128xf32>
    %cst_22 = arith.constant dense<0.000000e+00> : vector<8x128xf32>
    %50 = tpu.matmul %48, %49, %cst_22 {dimension_numbers = #tpu.dot_dimension_numbers<[1], [0], [0], [1], [0, 0, 1, 1], [], []>} : vector<8x64xf32>, vector<64x128xf32>, vector<8x128xf32> -> vector<8x128xf32>
    %c0_23 = arith.constant 0 : index
    %c0_24 = arith.constant 0 : index
    %51 = vector.load %arg5[%c0_23, %c0_24] : memref<1x128xf32, #tpu.memory_space<vmem>>, vector<1x128xf32>
    %52 = vector.broadcast %51 : vector<1x128xf32> to vector<8x128xf32>
    %53 = arith.addf %50, %52 : vector<8x128xf32>
    %c0_25 = arith.constant 0 : index
    %c0_26 = arith.constant 0 : index
    %54 = vector.load %arg6[%c0_25, %c0_26] : memref<8x128xf32, #tpu.memory_space<vmem>>, vector<8x128xf32>
    tpu.vector_store %arg6[%c0_25, %c0_26], %53 {strides = array<i32>} : memref<8x128xf32, #tpu.memory_space<vmem>>, vector<8x128xf32>,
    return
  }
  func.func @transform_0(%arg0: i32) -> (i32, i32) {
    %c0_i32 = arith.constant 0 : i32
    %c0_i32_0 = arith.constant 0 : i32
    return %arg0, %c0_i32 : i32, i32
  }
  func.func @transform_1(%arg0: i32) -> (i32, i32) {
    %c0_i32 = arith.constant 0 : i32
    %c0_i32_0 = arith.constant 0 : i32
    %c0_i32_1 = arith.constant 0 : i32
    return %c0_i32, %c0_i32_0 : i32, i32
  }
  func.func @transform_2(%arg0: i32) -> (i32, i32) {
    %c0_i32 = arith.constant 0 : i32
    %c0_i32_0 = arith.constant 0 : i32
    %c0_i32_1 = arith.constant 0 : i32
    return %c0_i32, %c0_i32_0 : i32, i32
  }
  func.func @transform_3(%arg0: i32) -> (i32, i32) {
    %c0_i32 = arith.constant 0 : i32
    %c0_i32_0 = arith.constant 0 : i32
    %c0_i32_1 = arith.constant 0 : i32
    return %c0_i32, %c0_i32_0 : i32, i32
  }
  func.func @transform_4(%arg0: i32) -> (i32, i32) {
    %c0_i32 = arith.constant 0 : i32
    %c0_i32_0 = arith.constant 0 : i32
    %c0_i32_1 = arith.constant 0 : i32
    return %c0_i32, %c0_i32_0 : i32, i32
  }
  func.func @transform_5(%arg0: i32) -> (i32, i32) {
    %c0_i32 = arith.constant 0 : i32
    %c0_i32_0 = arith.constant 0 : i32
    return %arg0, %c0_i32 : i32, i32
  }
}

</mosaic_0001>

<llo_original>
// kernel: tpu_custom_call.1
$region0: #{tpu_custom_call.1}
  #allocation0 [shape = 'u32[]', space=smem, size = 0x4, offset = 0x4, fixed_abs, tag = 'smem constant byte address 0x4 - core index']
  #allocation1 [shape = 'u32[144,128]{1,0:T(1,128)}', space=vmem, size = 0x12000, scoped, tag = 'internal scratch']
  %s0 = inlined_call_operand.vmem [shape: f32[16,128], index: 0, kind: input, shape index: {}]
  %s1 = inlined_call_operand.vmem [shape: f32[128,64], index: 1, kind: input, shape index: {}]
  %s2 = inlined_call_operand.vmem [shape: f32[1,64], index: 2, kind: input, shape index: {}]
  %s3 = inlined_call_operand.vmem [shape: f32[64,128], index: 3, kind: input, shape index: {}]
  %s4 = inlined_call_operand.vmem [shape: f32[1,128], index: 4, kind: input, shape index: {}]
  %s5 = inlined_call_operand.hbm [shape: f32[16,128], index: 5, kind: output, shape index: {}]
  %s6 = sld [smem:[#allocation0]]
  $region53: #{tpu_custom_call.1} parent=0
    _
  %s8 = ssub.s32 1, %s6
  %s9 = scalar_select 0, %s8, %s6
  $region1: #{tpu_custom_call.1} parent=0
    #allocation2 [shape = 'u8[8192]{0}', space=vmem, size = 0x2000, scoped, tag = 'output window, operand 0']
    #allocation3 [shape = 's32[2]{0}', space=sflag, size = 0x8, scoped, tag = 'scoped memory for tpu_custom_call.1']
    %10 = vsyncpa [#allocation3], 0
    %s11 = scalar_lea.sflag [#allocation3], 1
    %12 = vsyncpa %s11, 0
    loop: start=0, step=1, limit=4
    $region2: #{tpu_custom_call.1} parent=1 // loop_pre_header
      _
    $region3: #{tpu_custom_call.1} parent=1 // loop_header
      %s14 = sphi 0, %s18
      %p15 = scmp.ge.s32.totalorder %s14, 4
      %s24 = sphi 0, %s26
      %s27 = sphi 0, %s24
      %s28 = sphi 0, %s27
      %s44 = sphi 0, %s28
      %s48 = sphi 0, %s48
      %s50 = sphi 0, %s48
      %s51 = sphi 0, %s50
      %s65 = sphi 0, %s51
      %s69 = sphi 0, %s69
      %s71 = sphi 0, %s69
      %s72 = sphi 0, %s71
      %s86 = sphi 0, %s72
      %s90 = sphi 0, %s90
      %s92 = sphi 0, %s90
      %s93 = sphi 0, %s92
      %s107 = sphi 0, %s93
      %s111 = sphi 0, %s111
      %s113 = sphi 0, %s111
      %s114 = sphi 0, %s113
      %s128 = sphi 0, %s114
      %s134 = sphi 0, %s136
      %s137 = sphi 0, %s134
      %s138 = sphi 0, %s137
      %s154 = sphi 0, %s138
    $region4: #{tpu_custom_call.1} parent=1 // loop_header_branch
      %17 = sbr.rel (%p15) target = $region8
    $region5: #{tpu_custom_call.1} parent=1 // loop_body
      %s19 = ssub.s32 %s14, 1
      %s20 = ssub.s32 %s14, 2
      %s21 = sadd.s32 %s14, 1
      %s22 = ssub.s32 %s14, %s21
      %p23 = scmp.eq.s32.totalorder %s22, 0
      %s25 = sadd.s32 %s24, 1
      %s26 = scalar_select %p23, %s24, %s25
      %p29 = pneg %p23
      %p30 = scmp.eq.s32.totalorder %s14, 1
      %p31 = por %p29, %p30
      %p32 = scmp.ne.s32.totalorder %s24, %s27
      %p33 = scmp.eq.s32.totalorder %s14, 0
      %p34 = por %p32, %p33
      %p35 = scmp.ne.s32.totalorder %s24, %s27
      %p36 = scmp.eq.s32.totalorder %s19, 1
      %p37 = por %p35, %p36
      %p38 = scmp.ne.s32.totalorder %s27, %s28
      %p39 = scmp.eq.s32.totalorder %s19, 0
      %p40 = por %p38, %p39
      %p41 = scmp.ne.s32.totalorder %s27, %s28
      %p42 = scmp.eq.s32.totalorder %s20, 1
      %p43 = por %p41, %p42
      %p45 = scmp.ne.s32.totalorder %s28, %s44
      %p46 = scmp.eq.s32.totalorder %s20, 0
      %p47 = por %p45, %p46
      %s49 = sadd.s32 %s48, 1
      %p52 = scmp.eq.s32.totalorder %s14, 1
      %p53 = scmp.ne.s32.totalorder %s48, %s50
      %p54 = scmp.eq.s32.totalorder %s14, 0
      %p55 = por %p53, %p54
      %p56 = scmp.ne.s32.totalorder %s48, %s50
      %p57 = scmp.eq.s32.totalorder %s19, 1
      %p58 = por %p56, %p57
      %p59 = scmp.ne.s32.totalorder %s50, %s51
      %p60 = scmp.eq.s32.totalorder %s19, 0
      %p61 = por %p59, %p60
      %p62 = scmp.ne.s32.totalorder %s50, %s51
      %p63 = scmp.eq.s32.totalorder %s20, 1
      %p64 = por %p62, %p63
      %p66 = scmp.ne.s32.totalorder %s51, %s65
      %p67 = scmp.eq.s32.totalorder %s20, 0
      %p68 = por %p66, %p67
      %s70 = sadd.s32 %s69, 1
      %p73 = scmp.eq.s32.totalorder %s14, 1
      %p74 = scmp.ne.s32.totalorder %s69, %s71
      %p75 = scmp.eq.s32.totalorder %s14, 0
      %p76 = por %p74, %p75
      %p77 = scmp.ne.s32.totalorder %s69, %s71
      %p78 = scmp.eq.s32.totalorder %s19, 1
      %p79 = por %p77, %p78
      %p80 = scmp.ne.s32.totalorder %s71, %s72
      %p81 = scmp.eq.s32.totalorder %s19, 0
      %p82 = por %p80, %p81
      %p83 = scmp.ne.s32.totalorder %s71, %s72
      %p84 = scmp.eq.s32.totalorder %s20, 1
      %p85 = por %p83, %p84
      %p87 = scmp.ne.s32.totalorder %s72, %s86
      %p88 = scmp.eq.s32.totalorder %s20, 0
      %p89 = por %p87, %p88
      %s91 = sadd.s32 %s90, 1
      %p94 = scmp.eq.s32.totalorder %s14, 1
      %p95 = scmp.ne.s32.totalorder %s90, %s92
      %p96 = scmp.eq.s32.totalorder %s14, 0
      %p97 = por %p95, %p96
      %p98 = scmp.ne.s32.totalorder %s90, %s92
      %p99 = scmp.eq.s32.totalorder %s19, 1
      %p100 = por %p98, %p99
      %p101 = scmp.ne.s32.totalorder %s92, %s93
      %p102 = scmp.eq.s32.totalorder %s19, 0
      %p103 = por %p101, %p102
      %p104 = scmp.ne.s32.totalorder %s92, %s93
      %p105 = scmp.eq.s32.totalorder %s20, 1
      %p106 = por %p104, %p105
      %p108 = scmp.ne.s32.totalorder %s93, %s107
      %p109 = scmp.eq.s32.totalorder %s20, 0
      %p110 = por %p108, %p109
      %s112 = sadd.s32 %s111, 1
      %p115 = scmp.eq.s32.totalorder %s14, 1
      %p116 = scmp.ne.s32.totalorder %s111, %s113
      %p117 = scmp.eq.s32.totalorder %s14, 0
      %p118 = por %p116, %p117
      %p119 = scmp.ne.s32.totalorder %s111, %s113
      %p120 = scmp.eq.s32.totalorder %s19, 1
      %p121 = por %p119, %p120
      %p122 = scmp.ne.s32.totalorder %s113, %s114
      %p123 = scmp.eq.s32.totalorder %s19, 0
      %p124 = por %p122, %p123
      %p125 = scmp.ne.s32.totalorder %s113, %s114
      %p126 = scmp.eq.s32.totalorder %s20, 1
      %p127 = por %p125, %p126
      %p129 = scmp.ne.s32.totalorder %s114, %s128
      %p130 = scmp.eq.s32.totalorder %s20, 0
      %p131 = por %p129, %p130
      %s132 = ssub.s32 %s14, %s21
      %p133 = scmp.eq.s32.totalorder %s132, 0
      %s135 = sadd.s32 %s134, 1
      %s136 = scalar_select %p133, %s134, %s135
      %p139 = pneg %p133
      %p140 = scmp.eq.s32.totalorder %s14, 1
      %p141 = por %p139, %p140
      %p142 = scmp.ne.s32.totalorder %s134, %s137
      %p143 = scmp.eq.s32.totalorder %s14, 0
      %p144 = por %p142, %p143
      %p145 = scmp.ne.s32.totalorder %s134, %s137
      %p146 = scmp.eq.s32.totalorder %s19, 1
      %p147 = por %p145, %p146
      %p148 = scmp.ne.s32.totalorder %s137, %s138
      %p149 = scmp.eq.s32.totalorder %s19, 0
      %p150 = por %p148, %p149
      %p151 = scmp.ne.s32.totalorder %s137, %s138
      %p152 = scmp.eq.s32.totalorder %s20, 1
      %p153 = por %p151, %p152
      %p155 = scmp.ne.s32.totalorder %s138, %s154
      %p156 = scmp.eq.s32.totalorder %s20, 0
      %p157 = por %p155, %p156
      %p158 = scmp.le.s32.totalorder 1, %s14
      %p159 = scmp.lt.s32.totalorder %s14, 3
      %p160 = pnand %p158, %p159
      %p161 = pneg %p160
      // Predicated region
      $region9: #{tpu_custom_call.1} parent=5 // pred_check
        _
      $region10: #{tpu_custom_call.1} parent=5 // pred_check_branch
        %163 = sbr.rel (%p160) target = $region12
      $region11: #{tpu_custom_call.1} parent=5 // pred_region
        %s164 = ssub.s32 %s14, 1
        // Predicated region
        $region13: #{tpu_custom_call.1} parent=11 // pred_check
          %p165 = pneg %p61
        $region14: #{tpu_custom_call.1} parent=11 // pred_check_branch
          %167 = sbr.rel (%p165) target = $region16
        $region15: #{tpu_custom_call.1} parent=11 // pred_region
          _
        $region16: #{tpu_custom_call.1} parent=11 // pred_fallthru
          _
        // Predicated region
        $region17: #{tpu_custom_call.1} parent=11 // pred_check
          %p168 = pneg %p82
        $region18: #{tpu_custom_call.1} parent=11 // pred_check_branch
          %170 = sbr.rel (%p168) target = $region20
        $region19: #{tpu_custom_call.1} parent=11 // pred_region
          _
        $region20: #{tpu_custom_call.1} parent=11 // pred_fallthru
          _
        // Predicated region
        $region21: #{tpu_custom_call.1} parent=11 // pred_check
          %p171 = pneg %p103
        $region22: #{tpu_custom_call.1} parent=11 // pred_check_branch
          %173 = sbr.rel (%p171) target = $region24
        $region23: #{tpu_custom_call.1} parent=11 // pred_region
          _
        $region24: #{tpu_custom_call.1} parent=11 // pred_fallthru
          _
        // Predicated region
        $region25: #{tpu_custom_call.1} parent=11 // pred_check
          %p174 = pneg %p124
        $region26: #{tpu_custom_call.1} parent=11 // pred_check_branch
          %176 = sbr.rel (%p174) target = $region28
        $region27: #{tpu_custom_call.1} parent=11 // pred_region
          _
        $region28: #{tpu_custom_call.1} parent=11 // pred_fallthru
          _
      $region12: #{tpu_custom_call.1} parent=5 // pred_fallthru
        _
      %p177 = scmp.lt.s32.totalorder %s14, 2
      // Predicated region
      $region29: #{tpu_custom_call.1} parent=5 // pred_check
        %p178 = pneg %p177
      $region30: #{tpu_custom_call.1} parent=5 // pred_check_branch
        %180 = sbr.rel (%p178) target = $region32
      $region31: #{tpu_custom_call.1} parent=5 // pred_region
        // Predicated region
        $region33: #{tpu_custom_call.1} parent=31 // pred_check
          %p181 = pneg %p34
        $region34: #{tpu_custom_call.1} parent=31 // pred_check_branch
          %183 = sbr.rel (%p181) target = $region36
        $region35: #{tpu_custom_call.1} parent=31 // pred_region
          %p184 = scmp.lt.s32.totalorder %s14, 1
          %s185 = scalar_select %p184, %s14, 1
          %s186 = smul.addr %s185, 8
          %s187 = scalar_lea.vmem %s0, %s186
        $region36: #{tpu_custom_call.1} parent=31 // pred_fallthru
          _
      $region32: #{tpu_custom_call.1} parent=5 // pred_fallthru
        _
      %p188 = scmp.le.s32.totalorder 1, %s14
      %p189 = scmp.lt.s32.totalorder %s14, 3
      %p190 = pnand %p188, %p189
      %p191 = pneg %p190
      // Predicated region
      $region37: #{tpu_custom_call.1} parent=5 // pred_check
        _
      $region38: #{tpu_custom_call.1} parent=5 // pred_check_branch
        %193 = sbr.rel (%p190) target = $region40
      $region39: #{tpu_custom_call.1} parent=5 // pred_region
        %s194 = ssub.s32 %s14, 1
        %p195 = scmp.lt.s32.totalorder %s19, 1
        %s196 = scalar_select %p195, %s19, 1
        %s197 = smul.addr %s196, 8
        %s198 = scalar_lea.vmem %s0, %s197
        %p199 = pneg %p40
        %p200 = pneg %p37
        %p201 = pneg %p61
        %p202 = pneg %p58
        %p203 = pneg %p82
        %p204 = pneg %p79
        %p205 = pneg %p103
        %p206 = pneg %p100
        %p207 = pneg %p124
        %p208 = pneg %p121
        %p209 = pneg %p150
        %p210 = pneg %p147
        %s211 = sand.u32 %s137, 1
        %s212 = scalar_lea.sflag [#allocation3], %s211
        %s213 = sand.u32 %s137, 1
        %s214 = smul.addr %s213, 8
        %s215 = scalar_lea.vmem [#allocation2], %s214
        %p216 = scmp.lt.s32.totalorder %s19, 1
        %s217 = scalar_select %p216, %s19, 1
        %s218 = smul.addr %s217, 8
        %s219 = scalar_lea.vmem %s0, %s218
        %v220 = vld [vmem:[%s219] sm:$0xff]
        %v221 = vld [vmem:[%s1] sm:$0xff]
        %v222 = vld [vmem:[%s1 + $0x8] sm:$0xff]
        %v223 = vld [vmem:[%s1 + $0x10] sm:$0xff]
        %v224 = vld [vmem:[%s1 + $0x18] sm:$0xff]
        %v225 = vld [vmem:[%s1 + $0x20] sm:$0xff]
        %v226 = vld [vmem:[%s1 + $0x28] sm:$0xff]
        %v227 = vld [vmem:[%s1 + $0x30] sm:$0xff]
        %v228 = vld [vmem:[%s1 + $0x38] sm:$0xff]
        %v229 = vld [vmem:[%s1 + $0x40] sm:$0xff]
        %v230 = vld [vmem:[%s1 + $0x48] sm:$0xff]
        %v231 = vld [vmem:[%s1 + $0x50] sm:$0xff]
        %v232 = vld [vmem:[%s1 + $0x58] sm:$0xff]
        %v233 = vld [vmem:[%s1 + $0x60] sm:$0xff]
        %v234 = vld [vmem:[%s1 + $0x68] sm:$0xff]
        %v235 = vld [vmem:[%s1 + $0x70] sm:$0xff]
        %v236 = vld [vmem:[%s1 + $0x78] sm:$0xff]
        %v237 = vld [vmem:[%s2] sm:$0x1]
        %v239 = vlaneseq
        %v240 = vshrl.u32 %v239, 7
        %v241 = vsub.s32 0, %v240
        %v242 = vrot.slane %v237, %v241
        %244 = vmatprep.subr.mxu0 0.0
        %245 = vmatpush1.msra.mxu0 %v236
        %246 = vmatprep.subr.mxu0 0.0
        %247 = vmatpush1.msra.mxu0 %v235
        %248 = vmatprep.subr.mxu0 0.0
        %249 = vmatpush1.msra.mxu0 %v234
        %250 = vmatprep.subr.mxu0 0.0
        %251 = vmatpush1.msra.mxu0 %v233
        %252 = vmatprep.subr.mxu0 0.0
        %253 = vmatpush1.msra.mxu0 %v232
        %254 = vmatprep.subr.mxu0 0.0
        %255 = vmatpush1.msra.mxu0 %v231
        %256 = vmatprep.subr.mxu0 0.0
        %257 = vmatpush1.msra.mxu0 %v230
        %258 = vmatprep.subr.mxu0 0.0
        %259 = vmatpush1.msra.mxu0 %v229
        %260 = vmatprep.subr.mxu0 0.0
        %261 = vmatpush1.msra.mxu0 %v228
        %262 = vmatprep.subr.mxu0 0.0
        %263 = vmatpush1.msra.mxu0 %v227
        %264 = vmatprep.subr.mxu0 0.0
        %265 = vmatpush1.msra.mxu0 %v226
        %266 = vmatprep.subr.mxu0 0.0
        %267 = vmatpush1.msra.mxu0 %v225
        %268 = vmatprep.subr.mxu0 0.0
        %269 = vmatpush1.msra.mxu0 %v224
        %270 = vmatprep.subr.mxu0 0.0
        %271 = vmatpush1.msra.mxu0 %v223
        %272 = vmatprep.subr.mxu0 0.0
        %273 = vmatpush1.msra.mxu0 %v222
        %274 = vmatprep.subr.mxu0 0.0
        %275 = vmatpush1.msra.mxu0 %v221
        %276 = vmatprep.subr.mxu0 0.0
        %277 = vmatpush2.msra.mxu0 0.0
        %278 = vmatprep.subr.mxu0 0.0
        %279 = vmatpush2.msra.mxu0 0.0
        %280 = vmatprep.subr.mxu0 0.0
        %281 = vmatpush2.msra.mxu0 0.0
        %282 = vmatprep.subr.mxu0 0.0
        %283 = vmatpush2.msra.mxu0 0.0
        %284 = vmatprep.subr.mxu0 0.0
        %285 = vmatpush2.msra.mxu0 0.0
        %286 = vmatprep.subr.mxu0 0.0
        %287 = vmatpush2.msra.mxu0 0.0
        %288 = vmatprep.subr.mxu0 0.0
        %289 = vmatpush2.msra.mxu0 0.0
        %290 = vmatprep.subr.mxu0 0.0
        %291 = vmatpush2.msra.mxu0 0.0
        %292 = vmatprep.subr.mxu0 0.0
        %293 = vmatpush2.msra.mxu0 0.0
        %294 = vmatprep.subr.mxu0 0.0
        %295 = vmatpush2.msra.mxu0 0.0
        %296 = vmatprep.subr.mxu0 0.0
        %297 = vmatpush2.msra.mxu0 0.0
        %298 = vmatprep.subr.mxu0 0.0
        %299 = vmatpush2.msra.mxu0 0.0
        %300 = vmatprep.subr.mxu0 0.0
        %301 = vmatpush2.msra.mxu0 0.0
        %302 = vmatprep.subr.mxu0 0.0
        %303 = vmatpush2.msra.mxu0 0.0
        %304 = vmatprep.subr.mxu0 0.0
        %305 = vmatpush2.msra.mxu0 0.0
        %306 = vmatprep.subr.mxu0 0.0
        %307 = vmatpush2.msra.mxu0 0.0
        %308 = vmatprep.mubr.f32.mxu0 0.0
        %309 = vmatmul.mubr.f32.gmra.mxu0 %v220
        %v310 = vpop.f32.mrf.mxu0
        %v311 = vadd.f32 %v242, %v310
        %v312 = vpop.f32.mrf.mxu0
        %313 = vdwg.mxu0
        %v314 = vmul.f32 %v311, 0.5
        %v315 = vmul.f32 %v311, 0.70710677
        %v316 = vand.u32 2147483647, %v315
        %v317 = vmul.f32 %v316, 0.3275911
        %v318 = vadd.f32 %v317, 1.0
        %v319 = vrcp.pop %v318
        %v320 = vmul.f32 %v318, %v319
        %v321 = vsub.f32 2.0, %v320
        %v322 = vmul.f32 %v319, %v321
        %v323 = vmul.f32 %v322, 1.0614054
        %v324 = vadd.f32 %v323, -1.4531521
        %v325 = vmul.f32 %v324, %v322
        %v326 = vadd.f32 %v325, 1.4214138
        %v327 = vmul.f32 %v326, %v322
        %v328 = vadd.f32 %v327, -0.28449672
        %v329 = vmul.f32 %v328, %v322
        %v330 = vadd.f32 %v329, 0.2548296
        %v331 = vmul.f32 %v330, %v322
        %v332 = vsub.f32 0.0, %v316
        %v333 = vmul.f32 %v332, %v316
        %v334 = vmul.f32 %v333, 1.442695
        %v335 = vpow.pop %v334
        %v336 = vmul.f32 %v331, %v335
        %v337 = vsub.f32 1.0, %v336
        %vm338 = vcmp.lt.f32.partialorder %v315, 0.0
        %v339 = vsub.f32 0.0, %v337
        %v340 = vsel %vm338, %v339, %v337
        %v341 = vadd.f32 %v340, 1.0
        %v342 = vmul.f32 %v314, %v341
        %v343 = vld [vmem:[%s3] sm:$0xff]
        %v344 = vld [vmem:[%s3 + $0x8] sm:$0xff]
        %v345 = vld [vmem:[%s3 + $0x10] sm:$0xff]
        %v346 = vld [vmem:[%s3 + $0x18] sm:$0xff]
        %v347 = vld [vmem:[%s3 + $0x20] sm:$0xff]
        %v348 = vld [vmem:[%s3 + $0x28] sm:$0xff]
        %v349 = vld [vmem:[%s3 + $0x30] sm:$0xff]
        %v350 = vld [vmem:[%s3 + $0x38] sm:$0xff]
        %v351 = vld [vmem:[%s4] sm:$0x1]
        %v353 = vlaneseq
        %v354 = vshrl.u32 %v353, 7
        %v355 = vsub.s32 0, %v354
        %v356 = vrot.slane %v351, %v355
        %vm358 = vcmask 523264
        %v360 = vsel %vm358, %v342, 0
        %362 = vmatprep.subr.mxu0 0.0
        %363 = vmatpush1.msra.mxu0 0.0
        %364 = vmatprep.subr.mxu0 0.0
        %365 = vmatpush1.msra.mxu0 0.0
        %366 = vmatprep.subr.mxu0 0.0
        %367 = vmatpush1.msra.mxu0 0.0
        %368 = vmatprep.subr.mxu0 0.0
        %369 = vmatpush1.msra.mxu0 0.0
        %370 = vmatprep.subr.mxu0 0.0
        %371 = vmatpush1.msra.mxu0 0.0
        %372 = vmatprep.subr.mxu0 0.0
        %373 = vmatpush1.msra.mxu0 0.0
        %374 = vmatprep.subr.mxu0 0.0
        %375 = vmatpush1.msra.mxu0 0.0
        %376 = vmatprep.subr.mxu0 0.0
        %377 = vmatpush1.msra.mxu0 0.0
        %378 = vmatprep.subr.mxu0 0.0
        %379 = vmatpush1.msra.mxu0 %v350
        %380 = vmatprep.subr.mxu0 0.0
        %381 = vmatpush1.msra.mxu0 %v349
        %382 = vmatprep.subr.mxu0 0.0
        %383 = vmatpush1.msra.mxu0 %v348
        %384 = vmatprep.subr.mxu0 0.0
        %385 = vmatpush1.msra.mxu0 %v347
        %386 = vmatprep.subr.mxu0 0.0
        %387 = vmatpush1.msra.mxu0 %v346
        %388 = vmatprep.subr.mxu0 0.0
        %389 = vmatpush1.msra.mxu0 %v345
        %390 = vmatprep.subr.mxu0 0.0
        %391 = vmatpush1.msra.mxu0 %v344
        %392 = vmatprep.subr.mxu0 0.0
        %393 = vmatpush1.msra.mxu0 %v343
        %394 = vmatprep.subr.mxu0 0.0
        %395 = vmatpush2.msra.mxu0 0.0
        %396 = vmatprep.subr.mxu0 0.0
        %397 = vmatpush2.msra.mxu0 0.0
        %398 = vmatprep.subr.mxu0 0.0
        %399 = vmatpush2.msra.mxu0 0.0
        %400 = vmatprep.subr.mxu0 0.0
        %401 = vmatpush2.msra.mxu0 0.0
        %402 = vmatprep.subr.mxu0 0.0
        %403 = vmatpush2.msra.mxu0 0.0
        %404 = vmatprep.subr.mxu0 0.0
        %405 = vmatpush2.msra.mxu0 0.0
        %406 = vmatprep.subr.mxu0 0.0
        %407 = vmatpush2.msra.mxu0 0.0
        %408 = vmatprep.subr.mxu0 0.0
        %409 = vmatpush2.msra.mxu0 0.0
        %410 = vmatprep.subr.mxu0 0.0
        %411 = vmatpush2.msra.mxu0 0.0
        %412 = vmatprep.subr.mxu0 0.0
        %413 = vmatpush2.msra.mxu0 0.0
        %414 = vmatprep.subr.mxu0 0.0
        %415 = vmatpush2.msra.mxu0 0.0
        %416 = vmatprep.subr.mxu0 0.0
        %417 = vmatpush2.msra.mxu0 0.0
        %418 = vmatprep.subr.mxu0 0.0
        %419 = vmatpush2.msra.mxu0 0.0
        %420 = vmatprep.subr.mxu0 0.0
        %421 = vmatpush2.msra.mxu0 0.0
        %422 = vmatprep.subr.mxu0 0.0
        %423 = vmatpush2.msra.mxu0 0.0
        %424 = vmatprep.subr.mxu0 0.0
        %425 = vmatpush2.msra.mxu0 0.0
        %426 = vmatprep.mubr.f32.mxu0 0.0
        %427 = vmatmul.mubr.f32.gmra.mxu0 %v360
        %v428 = vpop.f32.mrf.mxu0
        %v429 = vadd.f32 %v356, %v428
        %v430 = vpop.f32.mrf.mxu0
        %431 = vdwg.mxu0
        %432 = vst [vmem:[%s215] sm:$0xff] %v429
        %s433 = sand.u32 %s137, 1
        %s434 = scalar_lea.sflag [#allocation3], %s433
        %s435 = sand.u32 %s137, 1
        %s436 = smul.addr %s435, 8
        %s437 = scalar_lea.vmem [#allocation2], %s436
        // Predicated region
        $region41: #{tpu_custom_call.1} parent=39 // pred_check
          %p438 = pneg %p147
        $region42: #{tpu_custom_call.1} parent=39 // pred_check_branch
          %440 = sbr.rel (%p438) target = $region44
        $region43: #{tpu_custom_call.1} parent=39 // pred_region
          %s442 = ssub.s32 128, 128
          %443 = vsyncadd %s434, %s442
          %s444 = smul.addr %s19, 128
          %s445 = scalar_lea.hbm %s5, %s444
          %s447 = sshll.u32 %s437, 4
          %s448 = int_to_ptr.vmem [resolvable:$true] %s447
          %450 = dma.vmem_to_hbm [thread:$0]  %s448, 128, %s445, %s434
        $region44: #{tpu_custom_call.1} parent=39 // pred_fallthru
          _
      $region40: #{tpu_custom_call.1} parent=5 // pred_fallthru
        _
      %p451 = scmp.le.s32.totalorder 2, %s14
      // Predicated region
      $region45: #{tpu_custom_call.1} parent=5 // pred_check
        %p452 = pneg %p451
      $region46: #{tpu_custom_call.1} parent=5 // pred_check_branch
        %454 = sbr.rel (%p452) target = $region48
      $region47: #{tpu_custom_call.1} parent=5 // pred_region
        %s455 = ssub.s32 %s14, 2
        // Predicated region
        $region49: #{tpu_custom_call.1} parent=47 // pred_check
          %p456 = pneg %p153
        $region50: #{tpu_custom_call.1} parent=47 // pred_check_branch
          %458 = sbr.rel (%p456) target = $region52
        $region51: #{tpu_custom_call.1} parent=47 // pred_region
          %s459 = sand.u32 %s138, 1
          %s460 = scalar_lea.sflag [#allocation3], %s459
          %s461 = sand.u32 %s138, 1
          %s462 = smul.addr %s461, 8
          %s463 = scalar_lea.vmem [#allocation2], %s462
          %464 = dma.done %s460, 128
        $region52: #{tpu_custom_call.1} parent=47 // pred_fallthru
          _
      $region48: #{tpu_custom_call.1} parent=5 // pred_fallthru
        _
    $region6: #{tpu_custom_call.1} parent=1 // loop_footer
      %s18 = sadd.s32 1, %s14
    $region7: #{tpu_custom_call.1} parent=1 // loop_footer_branch
      %13 = sbr.rel target = $region3
    $region8: #{tpu_custom_call.1} parent=1 // loop_exit
      _
    %465 = vsyncpa [#allocation3], 1
    %s466 = scalar_lea.sflag [#allocation3], 1
    %467 = vsyncpa %s466, 1

</llo_original>
